<compile_context>
chip_gen: v7x
topology: tpu7x:2x2x1
jax: 0.10.0
libtpu: 0.0.40
codegen_flags: <defaults>
</compile_context>

<pallas_src>
import jax
import jax.numpy as jnp
from jax import lax
from jax.experimental import pallas as pl
from jax.experimental.pallas import tpu as pltpu


def _make_vfs_kernel(td, D, H, W, ragged):
    """Build the per-(b*c)-channel slab kernel.

    Refs seen by the kernel:
      f_ref    : (td, H, W)  slab of one channel (input dtype)
      out_ref  : (H, W)      float32 accumulator, resident across the slab axis
      carry_ref: (2, H, W)   float32 sliding window of the two previous D-slices
    Requires: the slab grid axis is the innermost axis and runs in order per
    channel ("arbitrary"), and td >= 3.
    """
    f32 = jnp.float32

    def kernel(f_ref, out_ref, carry_ref):
        s = pl.program_id(1)  # slab index along D (innermost, in-order per g)

        @pl.when(s == 0)
        def _init():
            out_ref[...] = jnp.zeros_like(out_ref)
            # Seed the D-axis sliding window with rows 0 and 1 so that the
            # first two "central differences" (which have no d-2 neighbour)
            # evaluate to exactly zero.
            carry_ref[0, :, :] = f_ref[0, :, :].astype(f32)
            carry_ref[1, :, :] = f_ref[1, :, :].astype(f32)

        def body(d, carry):
            gd = s * td + d  # global D index of this slice

            # --- H axis (sublanes): central differences, sliced from the ref.
            dh = (f_ref[d, pl.ds(2, H - 2), :].astype(f32)
                  - f_ref[d, pl.ds(0, H - 2), :].astype(f32))
            dh2 = dh * dh

            # --- W axis (lanes) ---
            dw = (f_ref[d, :, pl.ds(2, W - 2)].astype(f32)
                  - f_ref[d, :, pl.ds(0, W - 2)].astype(f32))
            dw2 = dw * dw

            # --- D axis: difference vs the slice two positions back (carry).
            u_d = f_ref[d, :, :].astype(f32)
            slot = gd % 2
            dd = u_d - carry_ref[slot]
            dd2 = dd * dd

            if ragged:
                # Last slab may extend past D; its out-of-bounds slices hold
                # unspecified data — select them away before accumulating.
                valid = gd < D
                dh2 = jnp.where(valid, dh2, 0.0)
                dw2 = jnp.where(valid, dw2, 0.0)
                dd2 = jnp.where(valid, dd2, 0.0)

            # Interior sums: pure VPU adds into the resident f32 accumulator.
            out_ref[pl.ds(0, H - 2), :] += dh2
            out_ref[:, pl.ds(0, W - 2)] += dw2
            out_ref[...] += dd2
            # Replicate-pad edges for H and W: first & last diff counted twice.
            out_ref[pl.ds(0, 1), :] += dh2[0:1, :] + dh2[H - 3:H - 2, :]
            out_ref[:, pl.ds(0, 1)] += dw2[:, 0:1] + dw2[:, W - 3:W - 2]

            # Slide the two-slice window (consumed at gd+2, possibly next slab).
            carry_ref[slot] = u_d
            return carry

        lax.fori_loop(0, td, body, 0)

        # Replicate-pad edges of the D axis (global first / last difference).
        @pl.when(s == 0)
        def _first_edge():
            e = f_ref[2, :, :].astype(f32) - f_ref[0, :, :].astype(f32)
            out_ref[...] += e * e

        if not ragged:
            @pl.when(s == pl.num_programs(1) - 1)
            def _last_edge():
                e = (f_ref[td - 1, :, :].astype(f32)
                     - f_ref[td - 3, :, :].astype(f32))
                out_ref[...] += e * e
        # ragged case: the global last-edge term is added in the wrapper.

    return kernel


def vector_field_smoothness(deformation_field, h=1, *, max_slab_bytes=8 << 20):
    """Forward pass of VectorFieldSmoothness for a [B, 3, D, H, W] field."""
    B, C, D, H, W = deformation_field.shape
    assert C == 3, "VectorFieldSmoothness expects a 3-channel 3D vector field"
    assert D >= 3 and H >= 3 and W >= 3, "need >=3 voxels along each spatial axis"

    G = B * C
    # Pure reshape (no data movement, no transpose): W stays on lanes, H on
    # sublanes, and the D axis is tiled into slabs by the BlockSpec.
    f = deformation_field.reshape(G, D, H, W)

    itemsize = jnp.dtype(f.dtype).itemsize
    slice_bytes = H * W * itemsize
    # Largest slab depth within the VMEM budget (>= 3 slices for the stencil).
    td_budget = int(max(3, min(D, max_slab_bytes // max(1, slice_bytes))))
    if td_budget >= D:
        td = D
    else:
        td = None
        for cand in range(td_budget, 2, -1):  # prefer an exact divisor of D
            if D % cand == 0:
                td = cand
                break
        if td is None:
            td = td_budget  # ragged last slab, masked in-kernel
    ragged = (D % td) != 0
    ns = pl.cdiv(D, td)

    slab_bytes = td * slice_bytes
    # Double-buffered input slabs + small accumulator/carry; keep headroom
    # under v7x's 64 MiB physical VMEM.
    vmem_limit = int(min(48 << 20, max(32 << 20, 3 * slab_bytes)))

    partials = pl.pallas_call(
        _make_vfs_kernel(td, D, H, W, ragged),
        out_shape=jax.ShapeDtypeStruct((G, H, W), jnp.float32),
        grid_spec=pltpu.PrefetchScalarGridSpec(
            num_scalar_prefetch=0,
            grid=(G, ns),
            in_specs=[pl.BlockSpec((None, td, H, W), lambda g, s: (g, s, 0, 0))],
            out_specs=pl.BlockSpec((None, H, W), lambda g, s: (g, 0, 0)),
            scratch_shapes=[pltpu.VMEM((2, H, W), jnp.float32)],
        ),
        compiler_params=pltpu.CompilerParams(
            dimension_semantics=("parallel", "arbitrary"),
            vmem_limit_bytes=vmem_limit),
    )(f)

    total = jnp.sum(partials)
    if ragged:
        # Global last D-difference (replicate-pad double count): only computed
        # here when the last slab is ragged; reads 2 thin slices per channel.
        el = (f[:, D - 1, :, :].astype(jnp.float32)
              - f[:, D - 3, :, :].astype(jnp.float32))
        total = total + jnp.sum(el * el)

    inv_2h_sq = 1.0 / float(2 * h) ** 2
    return total * inv_2h_sq / B


def _reference(field, h=1):
    """Pure-JAX reference mirroring the PyTorch forward (for validation)."""
    f = field.astype(jnp.float32)

    def pad_rep(x, axis):
        first = jax.lax.slice_in_dim(x, 0, 1, axis=axis)
        last = jax.lax.slice_in_dim(x, x.shape[axis] - 1, x.shape[axis],
                                    axis=axis)
        return jnp.concatenate([first, x, last], axis=axis)

    total = jnp.float32(0.0)
    for c in range(3):
        u = f[:, c]                                   # (B, D, H, W)
        dH = pad_rep((u[:, :, 2:, :] - u[:, :, :-2, :]) / (2 * h), 2)
        dW = pad_rep((u[:, :, :, 2:] - u[:, :, :, :-2]) / (2 * h), 3)
        dD = pad_rep((u[:, 2:, :, :] - u[:, :-2, :, :]) / (2 * h), 1)
        total = total + jnp.sum(dH ** 2 + dW ** 2 + dD ** 2)
    return total / f.shape[0]


if __name__ == "__main__":
    key = jax.random.PRNGKey(0)
    # [B, C=3, D, H, W] — small 3D deformation field
    x = jax.random.normal(key, (2, 3, 8, 16, 16), dtype=jnp.float32)

    ref = _reference(x, h=1)

    # Single-slab path (whole D fits the budget).
    out = vector_field_smoothness(x, h=1)
    out = jax.block_until_ready(out)
    assert jnp.allclose(out, ref, rtol=1e-5, atol=1e-4), (out, ref)

    # Multi-slab, divisor path: td=4 -> 2 slabs, exercises the D-axis carry.
    out2 = vector_field_smoothness(x, h=1, max_slab_bytes=4 * 16 * 16 * 4)
    out2 = jax.block_until_ready(out2)
    assert jnp.allclose(out2, ref, rtol=1e-5, atol=1e-4), (out2, ref)

    # Ragged path: td=3 -> slabs of (3, 3, 2), exercises the in-kernel tail
    # masking and the wrapper-side last-edge term.
    out3 = vector_field_smoothness(x, h=1, max_slab_bytes=3 * 16 * 16 * 4)
    out3 = jax.block_until_ready(out3)
    assert jnp.allclose(out3, ref, rtol=1e-5, atol=1e-4), (out3, ref)

    print("KERNEL_OK")
</pallas_src>

<mosaic_0001>
module attributes {stable_mosaic.version = 11 : i64} {
  func.func @kernel(%arg0: i32, %arg1: i32, %arg2: memref<1x8x16x16xf32, #tpu.memory_space<vmem>>, %arg3: memref<1x16x16xf32, #tpu.memory_space<vmem>>, %arg4: memref<2x16x16xf32, #tpu.memory_space<vmem>>) attributes {dimension_semantics = [#tpu.dimension_semantics<parallel>, #tpu.dimension_semantics<arbitrary>], iteration_bounds = array<i64: 6, 1>, scalar_prefetch = 0 : i64, scratch_operands = 1 : i64, tpu.core_type = #tpu.core_type<tc>, window_params = [{transform_indices = @transform_0, window_bounds = array<i64: 1, 8, 16, 16>}, {transform_indices = @transform_1, window_bounds = array<i64: 1, 16, 16>}]} {
    %c0_i32 = arith.constant 0 : i32
    %0 = arith.cmpi eq, %arg1, %c0_i32 : i32
    %1 = arith.extui %0 : i1 to i32
    %c0_i32_0 = arith.constant 0 : i32
    %2 = arith.cmpi ne, %1, %c0_i32_0 : i32
    scf.if %2 {
      %cst = arith.constant 0.000000e+00 : f32
      %10 = vector.broadcast %cst : f32 to vector<16x16xf32>
      %c0 = arith.constant 0 : index
      %c0_7 = arith.constant 0 : index
      %c0_8 = arith.constant 0 : index
      %11 = vector.load %arg3[%c0, %c0_7, %c0_8] : memref<1x16x16xf32, #tpu.memory_space<vmem>>, vector<1x16x16xf32>
      %12 = vector.shape_cast %11 : vector<1x16x16xf32> to vector<16x16xf32>
      %13 = vector.shape_cast %10 : vector<16x16xf32> to vector<1x16x16xf32>
      tpu.vector_store %arg3[%c0, %c0_7, %c0_8], %13 {strides = array<i32>} : memref<1x16x16xf32, #tpu.memory_space<vmem>>, vector<1x16x16xf32>,
      %c0_9 = arith.constant 0 : index
      %c0_10 = arith.constant 0 : index
      %c0_11 = arith.constant 0 : index
      %c0_12 = arith.constant 0 : index
      %14 = vector.load %arg2[%c0_9, %c0_10, %c0_11, %c0_12] : memref<1x8x16x16xf32, #tpu.memory_space<vmem>>, vector<1x1x16x16xf32>
      %15 = vector.shape_cast %14 : vector<1x1x16x16xf32> to vector<16x16xf32>
      %c0_13 = arith.constant 0 : index
      %c0_14 = arith.constant 0 : index
      %c0_15 = arith.constant 0 : index
      %16 = vector.load %arg4[%c0_13, %c0_14, %c0_15] : memref<2x16x16xf32, #tpu.memory_space<vmem>>, vector<1x16x16xf32>
      %17 = vector.shape_cast %16 : vector<1x16x16xf32> to vector<16x16xf32>
      %18 = vector.shape_cast %15 : vector<16x16xf32> to vector<1x16x16xf32>
      tpu.vector_store %arg4[%c0_13, %c0_14, %c0_15], %18 {strides = array<i32>} : memref<2x16x16xf32, #tpu.memory_space<vmem>>, vector<1x16x16xf32>,
      %c0_16 = arith.constant 0 : index
      %c1 = arith.constant 1 : index
      %c0_17 = arith.constant 0 : index
      %c0_18 = arith.constant 0 : index
      %19 = vector.load %arg2[%c0_16, %c1, %c0_17, %c0_18] : memref<1x8x16x16xf32, #tpu.memory_space<vmem>>, vector<1x1x16x16xf32>
      %20 = vector.shape_cast %19 : vector<1x1x16x16xf32> to vector<16x16xf32>
      %c1_19 = arith.constant 1 : index
      %c0_20 = arith.constant 0 : index
      %c0_21 = arith.constant 0 : index
      %21 = vector.load %arg4[%c1_19, %c0_20, %c0_21] : memref<2x16x16xf32, #tpu.memory_space<vmem>>, vector<1x16x16xf32>
      %22 = vector.shape_cast %21 : vector<1x16x16xf32> to vector<16x16xf32>
      %23 = vector.shape_cast %20 : vector<16x16xf32> to vector<1x16x16xf32>
      tpu.vector_store %arg4[%c1_19, %c0_20, %c0_21], %23 {strides = array<i32>} : memref<2x16x16xf32, #tpu.memory_space<vmem>>, vector<1x16x16xf32>,
    } else {
    }
    %c0_i32_1 = arith.constant 0 : i32
    %c8_i32 = arith.constant 8 : i32
    %3 = arith.addi %c0_i32_1, %c8_i32 : i32
    %c1_i32 = arith.constant 1 : i32
    scf.for %arg5 = %c0_i32_1 to %3 step %c1_i32  : i32 {
      %c8_i32_7 = arith.constant 8 : i32
      %10 = arith.muli %arg1, %c8_i32_7 : i32
      %11 = arith.addi %10, %arg5 : i32
      %c0 = arith.constant 0 : index
      %12 = arith.index_cast %arg5 : i32 to index
      %c2 = arith.constant 2 : index
      %c0_8 = arith.constant 0 : index
      %13 = vector.load %arg2[%c0, %12, %c2, %c0_8] : memref<1x8x16x16xf32, #tpu.memory_space<vmem>>, vector<1x1x14x16xf32>
      %14 = vector.shape_cast %13 : vector<1x1x14x16xf32> to vector<14x16xf32>
      %c0_9 = arith.constant 0 : index
      %15 = arith.index_cast %arg5 : i32 to index
      %c0_10 = arith.constant 0 : index
      %c0_11 = arith.constant 0 : index
      %16 = vector.load %arg2[%c0_9, %15, %c0_10, %c0_11] : memref<1x8x16x16xf32, #tpu.memory_space<vmem>>, vector<1x1x14x16xf32>
      %17 = vector.shape_cast %16 : vector<1x1x14x16xf32> to vector<14x16xf32>
      %18 = arith.subf %14, %17 : vector<14x16xf32>
      %19 = arith.mulf %18, %18 : vector<14x16xf32>
      %c0_12 = arith.constant 0 : index
      %20 = arith.index_cast %arg5 : i32 to index
      %c0_13 = arith.constant 0 : index
      %c2_14 = arith.constant 2 : index
      %21 = vector.load %arg2[%c0_12, %20, %c0_13, %c2_14] : memref<1x8x16x16xf32, #tpu.memory_space<vmem>>, vector<1x1x16x14xf32>
      %22 = vector.shape_cast %21 : vector<1x1x16x14xf32> to vector<16x14xf32>
      %c0_15 = arith.constant 0 : index
      %23 = arith.index_cast %arg5 : i32 to index
      %c0_16 = arith.constant 0 : index
      %c0_17 = arith.constant 0 : index
      %24 = vector.load %arg2[%c0_15, %23, %c0_16, %c0_17] : memref<1x8x16x16xf32, #tpu.memory_space<vmem>>, vector<1x1x16x14xf32>
      %25 = vector.shape_cast %24 : vector<1x1x16x14xf32> to vector<16x14xf32>
      %26 = arith.subf %22, %25 : vector<16x14xf32>
      %27 = arith.mulf %26, %26 : vector<16x14xf32>
      %c0_18 = arith.constant 0 : index
      %28 = arith.index_cast %arg5 : i32 to index
      %c0_19 = arith.constant 0 : index
      %c0_20 = arith.constant 0 : index
      %29 = vector.load %arg2[%c0_18, %28, %c0_19, %c0_20] : memref<1x8x16x16xf32, #tpu.memory_space<vmem>>, vector<1x1x16x16xf32>
      %30 = vector.shape_cast %29 : vector<1x1x16x16xf32> to vector<16x16xf32>
      %c2_i32 = arith.constant 2 : i32
      %c0_i32_21 = arith.constant 0 : i32
      %31 = arith.cmpi eq, %c2_i32, %c0_i32_21 : i32
      %c1_i32_22 = arith.constant 1 : i32
      %32 = arith.select %31, %c1_i32_22, %c2_i32 : i32
      %33 = arith.remsi %11, %32 : i32
      %c0_i32_23 = arith.constant 0 : i32
      %34 = arith.cmpi ne, %33, %c0_i32_23 : i32
      %c0_i32_24 = arith.constant 0 : i32
      %35 = arith.cmpi slt, %33, %c0_i32_24 : i32
      %c0_i32_25 = arith.constant 0 : i32
      %36 = arith.cmpi slt, %32, %c0_i32_25 : i32
      %37 = arith.xori %35, %36 : i1
      %38 = arith.andi %37, %34 : i1
      %39 = arith.addi %33, %32 : i32
      %40 = arith.select %38, %39, %33 : i32
      %41 = arith.index_cast %40 : i32 to index
      %c0_26 = arith.constant 0 : index
      %c0_27 = arith.constant 0 : index
      %42 = vector.load %arg4[%41, %c0_26, %c0_27] : memref<2x16x16xf32, #tpu.memory_space<vmem>>, vector<1x16x16xf32>
      %43 = vector.shape_cast %42 : vector<1x16x16xf32> to vector<16x16xf32>
      %44 = arith.subf %30, %43 : vector<16x16xf32>
      %45 = arith.mulf %44, %44 : vector<16x16xf32>
      %c0_28 = arith.constant 0 : index
      %c0_29 = arith.constant 0 : index
      %c0_30 = arith.constant 0 : index
      %46 = vector.load %arg3[%c0_28, %c0_29, %c0_30] : memref<1x16x16xf32, #tpu.memory_space<vmem>>, vector<1x14x16xf32>
      %47 = vector.shape_cast %46 : vector<1x14x16xf32> to vector<14x16xf32>
      %48 = arith.addf %47, %19 : vector<14x16xf32>
      %c0_31 = arith.constant 0 : index
      %c0_32 = arith.constant 0 : index
      %c0_33 = arith.constant 0 : index
      %49 = vector.load %arg3[%c0_31, %c0_32, %c0_33] : memref<1x16x16xf32, #tpu.memory_space<vmem>>, vector<1x14x16xf32>
      %50 = vector.shape_cast %49 : vector<1x14x16xf32> to vector<14x16xf32>
      %51 = vector.shape_cast %48 : vector<14x16xf32> to vector<1x14x16xf32>
      tpu.vector_store %arg3[%c0_31, %c0_32, %c0_33], %51 {strides = array<i32>} : memref<1x16x16xf32, #tpu.memory_space<vmem>>, vector<1x14x16xf32>,
      %c0_34 = arith.constant 0 : index
      %c0_35 = arith.constant 0 : index
      %c0_36 = arith.constant 0 : index
      %52 = vector.load %arg3[%c0_34, %c0_35, %c0_36] : memref<1x16x16xf32, #tpu.memory_space<vmem>>, vector<1x16x14xf32>
      %53 = vector.shape_cast %52 : vector<1x16x14xf32> to vector<16x14xf32>
      %54 = arith.addf %53, %27 : vector<16x14xf32>
      %c0_37 = arith.constant 0 : index
      %c0_38 = arith.constant 0 : index
      %c0_39 = arith.constant 0 : index
      %55 = vector.load %arg3[%c0_37, %c0_38, %c0_39] : memref<1x16x16xf32, #tpu.memory_space<vmem>>, vector<1x16x14xf32>
      %56 = vector.shape_cast %55 : vector<1x16x14xf32> to vector<16x14xf32>
      %57 = vector.shape_cast %54 : vector<16x14xf32> to vector<1x16x14xf32>
      tpu.vector_store %arg3[%c0_37, %c0_38, %c0_39], %57 {strides = array<i32>} : memref<1x16x16xf32, #tpu.memory_space<vmem>>, vector<1x16x14xf32>,
      %c0_40 = arith.constant 0 : index
      %c0_41 = arith.constant 0 : index
      %c0_42 = arith.constant 0 : index
      %58 = vector.load %arg3[%c0_40, %c0_41, %c0_42] : memref<1x16x16xf32, #tpu.memory_space<vmem>>, vector<1x16x16xf32>
      %59 = vector.shape_cast %58 : vector<1x16x16xf32> to vector<16x16xf32>
      %60 = arith.addf %59, %45 : vector<16x16xf32>
      %c0_43 = arith.constant 0 : index
      %c0_44 = arith.constant 0 : index
      %c0_45 = arith.constant 0 : index
      %61 = vector.load %arg3[%c0_43, %c0_44, %c0_45] : memref<1x16x16xf32, #tpu.memory_space<vmem>>, vector<1x16x16xf32>
      %62 = vector.shape_cast %61 : vector<1x16x16xf32> to vector<16x16xf32>
      %63 = vector.shape_cast %60 : vector<16x16xf32> to vector<1x16x16xf32>
      tpu.vector_store %arg3[%c0_43, %c0_44, %c0_45], %63 {strides = array<i32>} : memref<1x16x16xf32, #tpu.memory_space<vmem>>, vector<1x16x16xf32>,
      %c0_46 = arith.constant 0 : index
      %c0_47 = arith.constant 0 : index
      %c0_48 = arith.constant 0 : index
      %64 = vector.load %arg3[%c0_46, %c0_47, %c0_48] : memref<1x16x16xf32, #tpu.memory_space<vmem>>, vector<1x1x16xf32>
      %65 = vector.shape_cast %64 : vector<1x1x16xf32> to vector<1x16xf32>
      %66 = vector.extract_strided_slice %19 {offsets = [0, 0], sizes = [1, 16], strides = [1, 1]} : vector<14x16xf32> to vector<1x16xf32>
      %67 = vector.extract_strided_slice %19 {offsets = [13, 0], sizes = [1, 16], strides = [1, 1]} : vector<14x16xf32> to vector<1x16xf32>
      %68 = arith.addf %66, %67 : vector<1x16xf32>
      %69 = arith.addf %65, %68 : vector<1x16xf32>
      %c0_49 = arith.constant 0 : index
      %c0_50 = arith.constant 0 : index
      %c0_51 = arith.constant 0 : index
      %70 = vector.load %arg3[%c0_49, %c0_50, %c0_51] : memref<1x16x16xf32, #tpu.memory_space<vmem>>, vector<1x1x16xf32>
      %71 = vector.shape_cast %70 : vector<1x1x16xf32> to vector<1x16xf32>
      %72 = vector.shape_cast %69 : vector<1x16xf32> to vector<1x1x16xf32>
      tpu.vector_store %arg3[%c0_49, %c0_50, %c0_51], %72 {strides = array<i32>} : memref<1x16x16xf32, #tpu.memory_space<vmem>>, vector<1x1x16xf32>,
      %c0_52 = arith.constant 0 : index
      %c0_53 = arith.constant 0 : index
      %c0_54 = arith.constant 0 : index
      %73 = vector.load %arg3[%c0_52, %c0_53, %c0_54] : memref<1x16x16xf32, #tpu.memory_space<vmem>>, vector<1x16x1xf32>
      %74 = vector.shape_cast %73 : vector<1x16x1xf32> to vector<16x1xf32>
      %75 = vector.extract_strided_slice %27 {offsets = [0, 0], sizes = [16, 1], strides = [1, 1]} : vector<16x14xf32> to vector<16x1xf32>
      %76 = vector.extract_strided_slice %27 {offsets = [0, 13], sizes = [16, 1], strides = [1, 1]} : vector<16x14xf32> to vector<16x1xf32>
      %77 = arith.addf %75, %76 : vector<16x1xf32>
      %78 = arith.addf %74, %77 : vector<16x1xf32>
      %c0_55 = arith.constant 0 : index
      %c0_56 = arith.constant 0 : index
      %c0_57 = arith.constant 0 : index
      %79 = vector.load %arg3[%c0_55, %c0_56, %c0_57] : memref<1x16x16xf32, #tpu.memory_space<vmem>>, vector<1x16x1xf32>
      %80 = vector.shape_cast %79 : vector<1x16x1xf32> to vector<16x1xf32>
      %81 = vector.shape_cast %78 : vector<16x1xf32> to vector<1x16x1xf32>
      tpu.vector_store %arg3[%c0_55, %c0_56, %c0_57], %81 {strides = array<i32>} : memref<1x16x16xf32, #tpu.memory_space<vmem>>, vector<1x16x1xf32>,
      %82 = arith.index_cast %40 : i32 to index
      %c0_58 = arith.constant 0 : index
      %c0_59 = arith.constant 0 : index
      %83 = vector.load %arg4[%82, %c0_58, %c0_59] : memref<2x16x16xf32, #tpu.memory_space<vmem>>, vector<1x16x16xf32>
      %84 = vector.shape_cast %83 : vector<1x16x16xf32> to vector<16x16xf32>
      %85 = vector.shape_cast %30 : vector<16x16xf32> to vector<1x16x16xf32>
      tpu.vector_store %arg4[%82, %c0_58, %c0_59], %85 {strides = array<i32>} : memref<2x16x16xf32, #tpu.memory_space<vmem>>, vector<1x16x16xf32>,
    }
    %c8_i32_2 = arith.constant 8 : i32
    %c0_i32_3 = arith.constant 0 : i32
    %4 = arith.cmpi eq, %arg1, %c0_i32_3 : i32
    %5 = arith.extui %4 : i1 to i32
    %c0_i32_4 = arith.constant 0 : i32
    %6 = arith.cmpi ne, %5, %c0_i32_4 : i32
    scf.if %6 {
      %c0 = arith.constant 0 : index
      %c2 = arith.constant 2 : index
      %c0_7 = arith.constant 0 : index
      %c0_8 = arith.constant 0 : index
      %10 = vector.load %arg2[%c0, %c2, %c0_7, %c0_8] : memref<1x8x16x16xf32, #tpu.memory_space<vmem>>, vector<1x1x16x16xf32>
      %11 = vector.shape_cast %10 : vector<1x1x16x16xf32> to vector<16x16xf32>
      %c0_9 = arith.constant 0 : index
      %c0_10 = arith.constant 0 : index
      %c0_11 = arith.constant 0 : index
      %c0_12 = arith.constant 0 : index
      %12 = vector.load %arg2[%c0_9, %c0_10, %c0_11, %c0_12] : memref<1x8x16x16xf32, #tpu.memory_space<vmem>>, vector<1x1x16x16xf32>
      %13 = vector.shape_cast %12 : vector<1x1x16x16xf32> to vector<16x16xf32>
      %14 = arith.subf %11, %13 : vector<16x16xf32>
      %c0_13 = arith.constant 0 : index
      %c0_14 = arith.constant 0 : index
      %c0_15 = arith.constant 0 : index
      %15 = vector.load %arg3[%c0_13, %c0_14, %c0_15] : memref<1x16x16xf32, #tpu.memory_space<vmem>>, vector<1x16x16xf32>
      %16 = vector.shape_cast %15 : vector<1x16x16xf32> to vector<16x16xf32>
      %17 = arith.mulf %14, %14 : vector<16x16xf32>
      %18 = arith.addf %16, %17 : vector<16x16xf32>
      %c0_16 = arith.constant 0 : index
      %c0_17 = arith.constant 0 : index
      %c0_18 = arith.constant 0 : index
      %19 = vector.load %arg3[%c0_16, %c0_17, %c0_18] : memref<1x16x16xf32, #tpu.memory_space<vmem>>, vector<1x16x16xf32>
      %20 = vector.shape_cast %19 : vector<1x16x16xf32> to vector<16x16xf32>
      %21 = vector.shape_cast %18 : vector<16x16xf32> to vector<1x16x16xf32>
      tpu.vector_store %arg3[%c0_16, %c0_17, %c0_18], %21 {strides = array<i32>} : memref<1x16x16xf32, #tpu.memory_space<vmem>>, vector<1x16x16xf32>,
    } else {
    }
    %c0_i32_5 = arith.constant 0 : i32
    %7 = arith.cmpi eq, %arg1, %c0_i32_5 : i32
    %8 = arith.extui %7 : i1 to i32
    %c0_i32_6 = arith.constant 0 : i32
    %9 = arith.cmpi ne, %8, %c0_i32_6 : i32
    scf.if %9 {
      %c0 = arith.constant 0 : index
      %c7 = arith.constant 7 : index
      %c0_7 = arith.constant 0 : index
      %c0_8 = arith.constant 0 : index
      %10 = vector.load %arg2[%c0, %c7, %c0_7, %c0_8] : memref<1x8x16x16xf32, #tpu.memory_space<vmem>>, vector<1x1x16x16xf32>
      %11 = vector.shape_cast %10 : vector<1x1x16x16xf32> to vector<16x16xf32>
      %c0_9 = arith.constant 0 : index
      %c5 = arith.constant 5 : index
      %c0_10 = arith.constant 0 : index
      %c0_11 = arith.constant 0 : index
      %12 = vector.load %arg2[%c0_9, %c5, %c0_10, %c0_11] : memref<1x8x16x16xf32, #tpu.memory_space<vmem>>, vector<1x1x16x16xf32>
      %13 = vector.shape_cast %12 : vector<1x1x16x16xf32> to vector<16x16xf32>
      %14 = arith.subf %11, %13 : vector<16x16xf32>
      %c0_12 = arith.constant 0 : index
      %c0_13 = arith.constant 0 : index
      %c0_14 = arith.constant 0 : index
      %15 = vector.load %arg3[%c0_12, %c0_13, %c0_14] : memref<1x16x16xf32, #tpu.memory_space<vmem>>, vector<1x16x16xf32>
      %16 = vector.shape_cast %15 : vector<1x16x16xf32> to vector<16x16xf32>
      %17 = arith.mulf %14, %14 : vector<16x16xf32>
      %18 = arith.addf %16, %17 : vector<16x16xf32>
      %c0_15 = arith.constant 0 : index
      %c0_16 = arith.constant 0 : index
      %c0_17 = arith.constant 0 : index
      %19 = vector.load %arg3[%c0_15, %c0_16, %c0_17] : memref<1x16x16xf32, #tpu.memory_space<vmem>>, vector<1x16x16xf32>
      %20 = vector.shape_cast %19 : vector<1x16x16xf32> to vector<16x16xf32>
      %21 = vector.shape_cast %18 : vector<16x16xf32> to vector<1x16x16xf32>
      tpu.vector_store %arg3[%c0_15, %c0_16, %c0_17], %21 {strides = array<i32>} : memref<1x16x16xf32, #tpu.memory_space<vmem>>, vector<1x16x16xf32>,
    } else {
    }
    return
  }
  func.func @transform_0(%arg0: i32, %arg1: i32) -> (i32, i32, i32, i32) {
    %c0_i32 = arith.constant 0 : i32
    %c0_i32_0 = arith.constant 0 : i32
    %c0_i32_1 = arith.constant 0 : i32
    return %arg0, %arg1, %c0_i32, %c0_i32_0 : i32, i32, i32, i32
  }
  func.func @transform_1(%arg0: i32, %arg1: i32) -> (i32, i32, i32) {
    %c0_i32 = arith.constant 0 : i32
    %c0_i32_0 = arith.constant 0 : i32
    %c0_i32_1 = arith.constant 0 : i32
    return %arg0, %c0_i32, %c0_i32_0 : i32, i32, i32
  }
}

</mosaic_0001>

<llo_original>
// kernel: tpu_custom_call.1
$region0: #{tpu_custom_call.1}
  #allocation0 [shape = 'u32[]', space=smem, size = 0x4, offset = 0x4, fixed_abs, tag = 'smem constant byte address 0x4 - core index']
  #allocation1 [shape = 'u32[144,128]{1,0:T(1,128)}', space=vmem, size = 0x12000, scoped, tag = 'internal scratch']
  #allocation2 [shape = 'f32[2,16,16]{2,1,0:T(8,128)}', space=vmem, size = 0x4000, scoped, tag = 'scratch operand']
  %s0 = inlined_call_operand.hbm [shape: f32[6,8,16,16], index: 0, kind: input, shape index: {}]
  %s1 = inlined_call_operand.hbm [shape: f32[6,16,16], index: 1, kind: output, shape index: {}]
  %s2 = sld [smem:[#allocation0]]
  $region56: #{tpu_custom_call.1} parent=0
    _
  %s4 = ssub.s32 1, %s2
  %s5 = scalar_select 0, %s4, %s2
  $region1: #{tpu_custom_call.1} parent=0
    #allocation3 [shape = 'u8[131072]{0}', space=vmem, size = 0x20000, scoped, tag = 'input window, operand 0']
    #allocation4 [shape = 's32[2]{0}', space=sflag, size = 0x8, scoped, tag = 'scoped memory for tpu_custom_call.1']
    #allocation5 [shape = 's32[2]{0}', space=sflag, size = 0x8, scoped, tag = 'scoped memory for tpu_custom_call.1']
    #allocation6 [shape = 'u8[16384]{0}', space=vmem, size = 0x4000, scoped, tag = 'output window, operand 0']
    %6 = vsyncpa [#allocation4], 0
    %s7 = scalar_lea.sflag [#allocation4], 1
    %8 = vsyncpa %s7, 0
    %9 = vsyncpa [#allocation5], 0
    %s10 = scalar_lea.sflag [#allocation5], 1
    %11 = vsyncpa %s10, 0
    loop: start=0, step=1, limit=8
    $region2: #{tpu_custom_call.1} parent=1 // loop_pre_header
      _
    $region3: #{tpu_custom_call.1} parent=1 // loop_header
      %s13 = sphi 0, %s17
      %p14 = scmp.ge.s32.totalorder %s13, 8
      %s20 = sphi 0, %s32
      %s21 = sphi 0, %s28
      %s22 = sphi 0, %s20
      %s23 = sphi 0, %s21
      %s24 = sphi 0, %s22
      %s25 = sphi 0, %s23
      %s37 = sphi 0, %s39
      %s40 = sphi 0, %s37
      %s41 = sphi 0, %s40
      %s57 = sphi 0, %s41
      %s63 = sphi 0, %s65
      %s66 = sphi 0, %s63
      %s67 = sphi 0, %s66
      %s83 = sphi 0, %s67
    $region4: #{tpu_custom_call.1} parent=1 // loop_header_branch
      %16 = sbr.rel (%p14) target = $region8
    $region5: #{tpu_custom_call.1} parent=1 // loop_body
      %s18 = ssub.s32 %s13, 1
      %s19 = ssub.s32 %s13, 2
      %s26 = sadd.s32 1, %s21
      %p27 = scmp.ge.s32.totalorder %s26, 1
      %s28 = scalar_select %p27, 0, %s26
      %s29 = sadd.s32 1, %s20
      %s30 = scalar_select %p27, %s29, %s20
      %p31 = scmp.ge.s32.totalorder %s30, 6
      %s32 = scalar_select %p31, 0, %s30
      %s33 = ssub.s32 %s20, %s32
      %s34 = ssub.s32 %s21, %s28
      %s35 = sor.u32 %s33, %s34
      %p36 = scmp.eq.s32.totalorder %s35, 0
      %s38 = sadd.s32 %s37, 1
      %s39 = scalar_select %p36, %s37, %s38
      %p42 = pneg %p36
      %p43 = scmp.eq.s32.totalorder %s13, 5
      %p44 = por %p42, %p43
      %p45 = scmp.ne.s32.totalorder %s37, %s40
      %p46 = scmp.eq.s32.totalorder %s13, 0
      %p47 = por %p45, %p46
      %p48 = scmp.ne.s32.totalorder %s37, %s40
      %p49 = scmp.eq.s32.totalorder %s18, 5
      %p50 = por %p48, %p49
      %p51 = scmp.ne.s32.totalorder %s40, %s41
      %p52 = scmp.eq.s32.totalorder %s18, 0
      %p53 = por %p51, %p52
      %p54 = scmp.ne.s32.totalorder %s40, %s41
      %p55 = scmp.eq.s32.totalorder %s19, 5
      %p56 = por %p54, %p55
      %p58 = scmp.ne.s32.totalorder %s41, %s57
      %p59 = scmp.eq.s32.totalorder %s19, 0
      %p60 = por %p58, %p59
      %s61 = ssub.s32 %s20, %s32
      %p62 = scmp.eq.s32.totalorder %s61, 0
      %s64 = sadd.s32 %s63, 1
      %s65 = scalar_select %p62, %s63, %s64
      %p68 = pneg %p62
      %p69 = scmp.eq.s32.totalorder %s13, 5
      %p70 = por %p68, %p69
      %p71 = scmp.ne.s32.totalorder %s63, %s66
      %p72 = scmp.eq.s32.totalorder %s13, 0
      %p73 = por %p71, %p72
      %p74 = scmp.ne.s32.totalorder %s63, %s66
      %p75 = scmp.eq.s32.totalorder %s18, 5
      %p76 = por %p74, %p75
      %p77 = scmp.ne.s32.totalorder %s66, %s67
      %p78 = scmp.eq.s32.totalorder %s18, 0
      %p79 = por %p77, %p78
      %p80 = scmp.ne.s32.totalorder %s66, %s67
      %p81 = scmp.eq.s32.totalorder %s19, 5
      %p82 = por %p80, %p81
      %p84 = scmp.ne.s32.totalorder %s67, %s83
      %p85 = scmp.eq.s32.totalorder %s19, 0
      %p86 = por %p84, %p85
      %p87 = scmp.le.s32.totalorder 1, %s13
      %p88 = scmp.lt.s32.totalorder %s13, 7
      %p89 = pnand %p87, %p88
      %p90 = pneg %p89
      // Predicated region
      $region9: #{tpu_custom_call.1} parent=5 // pred_check
        _
      $region10: #{tpu_custom_call.1} parent=5 // pred_check_branch
        %92 = sbr.rel (%p89) target = $region12
      $region11: #{tpu_custom_call.1} parent=5 // pred_region
        %s93 = ssub.s32 %s13, 1
      $region12: #{tpu_custom_call.1} parent=5 // pred_fallthru
        _
      %p94 = scmp.lt.s32.totalorder %s13, 6
      // Predicated region
      $region13: #{tpu_custom_call.1} parent=5 // pred_check
        %p95 = pneg %p94
      $region14: #{tpu_custom_call.1} parent=5 // pred_check_branch
        %97 = sbr.rel (%p95) target = $region16
      $region15: #{tpu_custom_call.1} parent=5 // pred_region
        // Predicated region
        $region17: #{tpu_custom_call.1} parent=15 // pred_check
          %p98 = pneg %p47
        $region18: #{tpu_custom_call.1} parent=15 // pred_check_branch
          %100 = sbr.rel (%p98) target = $region20
        $region19: #{tpu_custom_call.1} parent=15 // pred_region
          %s101 = sand.u32 %s37, 1
          %s102 = scalar_lea.sflag [#allocation4], %s101
          %s103 = sand.u32 %s37, 1
          %s104 = smul.addr %s103, 128
          %s105 = scalar_lea.vmem [#allocation3], %s104
          %s106 = smul.u32 8, %s21
          %s108 = ssub.s32 2048, 2048
          %109 = vsyncadd %s102, %s108
          %s110 = smul.addr %s106, 2
          %s111 = smul.addr %s20, 16
          %s112 = sadd.s32 %s110, %s111
          %s113 = smul.addr %s112, 128
          %s114 = scalar_lea.hbm %s0, %s113
          %s115 = sshll.u32 %s105, 4
          %s116 = int_to_ptr.vmem [resolvable:$true] %s115
          %121 = dma.hbm_to_vmem [thread:$0]  %s114, 2048, %s116, %s102, 128, 128, 8
        $region20: #{tpu_custom_call.1} parent=15 // pred_fallthru
          _
      $region16: #{tpu_custom_call.1} parent=5 // pred_fallthru
        _
      %p122 = scmp.le.s32.totalorder 1, %s13
      %p123 = scmp.lt.s32.totalorder %s13, 7
      %p124 = pnand %p122, %p123
      %p125 = pneg %p124
      // Predicated region
      $region21: #{tpu_custom_call.1} parent=5 // pred_check
        _
      $region22: #{tpu_custom_call.1} parent=5 // pred_check_branch
        %127 = sbr.rel (%p124) target = $region24
      $region23: #{tpu_custom_call.1} parent=5 // pred_region
        %s128 = ssub.s32 %s13, 1
        %s129 = sand.u32 %s40, 1
        %s130 = scalar_lea.sflag [#allocation4], %s129
        %s131 = sand.u32 %s40, 1
        %s132 = smul.addr %s131, 128
        %s133 = scalar_lea.vmem [#allocation3], %s132
        // Predicated region
        $region25: #{tpu_custom_call.1} parent=23 // pred_check
          %p134 = pneg %p53
        $region26: #{tpu_custom_call.1} parent=23 // pred_check_branch
          %136 = sbr.rel (%p134) target = $region28
        $region27: #{tpu_custom_call.1} parent=23 // pred_region
          %137 = dma.done %s130, 2048
        $region28: #{tpu_custom_call.1} parent=23 // pred_fallthru
          _
        %s138 = sand.u32 %s40, 1
        %s139 = scalar_lea.sflag [#allocation4], %s138
        %s140 = sand.u32 %s40, 1
        %s141 = smul.addr %s140, 128
        %s142 = scalar_lea.vmem [#allocation3], %s141
        %p143 = pneg %p53
        %p144 = pneg %p50
        %p145 = pneg %p79
        %p146 = pneg %p76
        %s147 = sand.u32 %s66, 1
        %s148 = scalar_lea.sflag [#allocation5], %s147
        %s149 = sand.u32 %s66, 1
        %s150 = smul.addr %s149, 16
        %s151 = scalar_lea.vmem [#allocation6], %s150
        %s152 = smul.u32 8, %s23
        %p153 = scmp.eq.s32.totalorder %s23, 0
        // Predicated region
        $region29: #{tpu_custom_call.1} parent=23 // pred_check
          %p154 = pneg %p153
        $region30: #{tpu_custom_call.1} parent=23 // pred_check_branch
          %156 = sbr.rel (%p154) target = $region32
        $region31: #{tpu_custom_call.1} parent=23 // pred_region
          %vm157 = vcmask 130048
          %158 = vst.msk [vmem:[%s151] sm:$0xff] %vm157, 0.0
          %159 = vst.msk [vmem:[%s151 + $0x8] sm:$0xff] %vm157, 0.0
          %v160 = vld [vmem:[%s133] sm:$0xff]
          %v161 = vld [vmem:[%s133 + $0x8] sm:$0xff]
          %162 = vst.msk [vmem:[#allocation2] sm:$0xff] %vm157, %v160
          %163 = vst.msk [vmem:[#allocation2 + $0x8] sm:$0xff] %vm157, %v161
          %s164 = scalar_lea.vmem %s133, 16 [#allocation3]
          %v165 = vld [vmem:[%s164] sm:$0xff]
          %v166 = vld [vmem:[%s164 + $0x8] sm:$0xff]
          %s167 = scalar_lea.vmem [#allocation2], 16
          %168 = vst.msk [vmem:[%s167] sm:$0xff] %vm157, %v165
          %169 = vst.msk [vmem:[%s167 + $0x8] sm:$0xff] %vm157, %v166
        $region32: #{tpu_custom_call.1} parent=23 // pred_fallthru
          _
        loop: start=0, step=1, limit=8
        $region33: #{tpu_custom_call.1} parent=23 // loop_pre_header
          _
        $region34: #{tpu_custom_call.1} parent=23 // loop_header
          %s171 = sphi 0, %s175
          %p172 = scmp.ge.s32.totalorder %s171, 8
        $region35: #{tpu_custom_call.1} parent=23 // loop_header_branch
          %174 = sbr.rel (%p172) target = $region39
        $region36: #{tpu_custom_call.1} parent=23 // loop_body
          %s176 = smul.u32 %s23, 8
          %s177 = sadd.s32 %s176, %s171
          %s178 = smul.u32 %s171, 16
          %s179 = scalar_lea.vmem %s133, %s178 [#allocation3]
          %v180 = vld [vmem:[%s179 + $0x2] sm:$0xff]
          %v181 = vld [vmem:[%s179 + $0xa] sm:$0x3f]
          %v182 = vld [vmem:[%s179] sm:$0xff]
          %v183 = vld [vmem:[%s179 + $0x8] sm:$0x3f]
          %v184 = vsub.f32 %v180, %v182
          %v185 = vsub.f32 %v181, %v183
          %v186 = vmul.f32 %v184, %v184
          %v187 = vmul.f32 %v185, %v185
          %v188 = vld [vmem:[%s179 + $0x8] sm:$0xff]
          %191 = vrot.lane.b32.xlu0 %v182, 2
          %v192 = vpop.permute.xlu0 %191
          %193 = vrot.lane.b32.xlu0 %v188, 2
          %v194 = vpop.permute.xlu0 %193
          %v197 = vsub.f32 %v182, %v192
          %v198 = vsub.f32 %v188, %v194
          %v199 = vmul.f32 %v197, %v197
          %v200 = vmul.f32 %v198, %v198
          %p201 = scmp.lt.s32.totalorder %s177, 0
          %s202 = ssub.s32 0, %s177
          %s203 = scalar_select %p201, %s202, %s177
          %s204 = sand.u32 %s203, 1
          %s205 = ssub.s32 0, %s204
          %s206 = scalar_select %p201, %s205, %s204
          %p207 = scmp.ne.s32.totalorder %s206, 0
          %p208 = scmp.lt.s32.totalorder %s206, 0
          %p209 = pnand %p208, %p207
          %p210 = pneg %p209
          %s211 = sadd.s32 %s206, 2
          %s212 = scalar_select %p210, %s211, %s206
          %s213 = smul.u32 %s212, 16
          %s214 = scalar_lea.vmem [#allocation2], %s213
          %v215 = vld [vmem:[%s214] sm:$0xff]
          %v216 = vld [vmem:[%s214 + $0x8] sm:$0xff]
          %v217 = vsub.f32 %v182, %v215
          %v218 = vsub.f32 %v188, %v216
          %v219 = vmul.f32 %v217, %v217
          %v220 = vmul.f32 %v218, %v218
          %v221 = vld [vmem:[%s151] sm:$0xff]
          %v222 = vld [vmem:[%s151 + $0x8] sm:$0x3f]
          %v223 = vadd.f32 %v221, %v186
          %v224 = vadd.f32 %v222, %v187
          %vm225 = vcmask 130048
          %226 = vst.msk [vmem:[%s151] sm:$0xff] %vm225, %v223
          %vm227 = vcmask 128000
          %228 = vst.msk [vmem:[%s151 + $0x8] sm:$0x3f] %vm227, %v224
          %v229 = vld [vmem:[%s151] sm:$0xff]
          %v230 = vld [vmem:[%s151 + $0x8] sm:$0xff]
          %233 = vrot.lane.b32.xlu0 %v199, 126
          %v234 = vpop.permute.xlu0 %233
          %235 = vrot.lane.b32.xlu0 %v200, 126
          %v236 = vpop.permute.xlu0 %235
          %v239 = vadd.f32 %v229, %v234
          %v240 = vadd.f32 %v230, %v236
          %vm241 = vcmask 113664
          %242 = vst.msk [vmem:[%s151] sm:$0xff] %vm241, %v239
          %243 = vst.msk [vmem:[%s151 + $0x8] sm:$0xff] %vm241, %v240
          %v244 = vld [vmem:[%s151] sm:$0xff]
          %v245 = vld [vmem:[%s151 + $0x8] sm:$0xff]
          %v246 = vadd.f32 %v244, %v219
          %v247 = vadd.f32 %v245, %v220
          %248 = vst.msk [vmem:[%s151] sm:$0xff] %vm225, %v246
          %249 = vst.msk [vmem:[%s151 + $0x8] sm:$0xff] %vm225, %v247
          %v250 = vld [vmem:[%s151] sm:$0x1]
          %v252 = vrot.slane %v187, 5
          %v254 = vadd.f32 %v186, %v252
          %v255 = vadd.f32 %v250, %v254
          %vm256 = vcmask 122880
          %257 = vst.msk [vmem:[%s151] sm:$0x1] %vm256, %v255
          %v258 = vld [vmem:[%s151] sm:$0xff]
          %v259 = vld [vmem:[%s151 + $0x8] sm:$0xff]
          %260 = vrot.lane.b32.xlu0 %v199, 115
          %v261 = vpop.permute.xlu0 %260
          %262 = vrot.lane.b32.xlu0 %v200, 115
          %v263 = vpop.permute.xlu0 %262
          %v266 = vadd.f32 %v199, %v261
          %v267 = vadd.f32 %v200, %v263
          %270 = vrot.lane.b32.xlu0 %v266, 126
          %v271 = vpop.permute.xlu0 %270
          %272 = vrot.lane.b32.xlu0 %v267, 126
          %v273 = vpop.permute.xlu0 %272
          %v276 = vadd.f32 %v258, %v271
          %v277 = vadd.f32 %v259, %v273
          %vm278 = vcmask 7168
          %279 = vst.msk [vmem:[%s151] sm:$0xff] %vm278, %v276
          %280 = vst.msk [vmem:[%s151 + $0x8] sm:$0xff] %vm278, %v277
          %281 = vst.msk [vmem:[%s214] sm:$0xff] %vm225, %v182
          %282 = vst.msk [vmem:[%s214 + $0x8] sm:$0xff] %vm225, %v188
        $region37: #{tpu_custom_call.1} parent=23 // loop_footer
          %s175 = sadd.s32 1, %s171
        $region38: #{tpu_custom_call.1} parent=23 // loop_footer_branch
          %170 = sbr.rel target = $region34
        $region39: #{tpu_custom_call.1} parent=23 // loop_exit
          _
        // Predicated region
        $region40: #{tpu_custom_call.1} parent=23 // pred_check
          %p283 = pneg %p153
        $region41: #{tpu_custom_call.1} parent=23 // pred_check_branch
          %285 = sbr.rel (%p283) target = $region43
        $region42: #{tpu_custom_call.1} parent=23 // pred_region
          %s286 = scalar_lea.vmem %s133, 32 [#allocation3]
          %v287 = vld [vmem:[%s286] sm:$0xff]
          %v288 = vld [vmem:[%s286 + $0x8] sm:$0xff]
          %v289 = vld [vmem:[%s133] sm:$0xff]
          %v290 = vld [vmem:[%s133 + $0x8] sm:$0xff]
          %v291 = vsub.f32 %v287, %v289
          %v292 = vsub.f32 %v288, %v290
          %v293 = vld [vmem:[%s151] sm:$0xff]
          %v294 = vld [vmem:[%s151 + $0x8] sm:$0xff]
          %v295 = vmul.f32 %v291, %v291
          %v296 = vmul.f32 %v292, %v292
          %v297 = vadd.f32 %v293, %v295
          %v298 = vadd.f32 %v294, %v296
          %vm299 = vcmask 130048
          %300 = vst.msk [vmem:[%s151] sm:$0xff] %vm299, %v297
          %301 = vst.msk [vmem:[%s151 + $0x8] sm:$0xff] %vm299, %v298
          %s302 = scalar_lea.vmem %s133, 112 [#allocation3]
          %v303 = vld [vmem:[%s302] sm:$0xff]
          %v304 = vld [vmem:[%s302 + $0x8] sm:$0xff]
          %s305 = scalar_lea.vmem %s133, 80 [#allocation3]
          %v306 = vld [vmem:[%s305] sm:$0xff]
          %v307 = vld [vmem:[%s305 + $0x8] sm:$0xff]
          %v308 = vsub.f32 %v303, %v306
          %v309 = vsub.f32 %v304, %v307
          %v310 = vld [vmem:[%s151] sm:$0xff]
          %v311 = vld [vmem:[%s151 + $0x8] sm:$0xff]
          %v312 = vmul.f32 %v308, %v308
          %v313 = vmul.f32 %v309, %v309
          %v314 = vadd.f32 %v310, %v312
          %v315 = vadd.f32 %v311, %v313
          %316 = vst.msk [vmem:[%s151] sm:$0xff] %vm299, %v314
          %317 = vst.msk [vmem:[%s151 + $0x8] sm:$0xff] %vm299, %v315
        $region43: #{tpu_custom_call.1} parent=23 // pred_fallthru
          _
        %s318 = sand.u32 %s66, 1
        %s319 = scalar_lea.sflag [#allocation5], %s318
        %s320 = sand.u32 %s66, 1
        %s321 = smul.addr %s320, 16
        %s322 = scalar_lea.vmem [#allocation6], %s321
        // Predicated region
        $region44: #{tpu_custom_call.1} parent=23 // pred_check
          %p323 = pneg %p76
        $region45: #{tpu_custom_call.1} parent=23 // pred_check_branch
          %325 = sbr.rel (%p323) target = $region47
        $region46: #{tpu_custom_call.1} parent=23 // pred_region
          %s327 = ssub.s32 256, 256
          %328 = vsyncadd %s319, %s327
          %s329 = smul.addr %s22, 2
          %s330 = smul.addr %s329, 128
          %s331 = scalar_lea.hbm %s1, %s330
          %s332 = sshll.u32 %s322, 4
          %s333 = int_to_ptr.vmem [resolvable:$true] %s332
          %338 = dma.vmem_to_hbm [thread:$0]  %s333, 256, %s331, %s319, 128, 128, 8
        $region47: #{tpu_custom_call.1} parent=23 // pred_fallthru
          _
      $region24: #{tpu_custom_call.1} parent=5 // pred_fallthru
        _
      %p339 = scmp.le.s32.totalorder 2, %s13
      // Predicated region
      $region48: #{tpu_custom_call.1} parent=5 // pred_check
        %p340 = pneg %p339
      $region49: #{tpu_custom_call.1} parent=5 // pred_check_branch
        %342 = sbr.rel (%p340) target = $region51
      $region50: #{tpu_custom_call.1} parent=5 // pred_region
        %s343 = ssub.s32 %s13, 2
        // Predicated region
        $region52: #{tpu_custom_call.1} parent=50 // pred_check
          %p344 = pneg %p82
        $region53: #{tpu_custom_call.1} parent=50 // pred_check_branch
          %346 = sbr.rel (%p344) target = $region55
        $region54: #{tpu_custom_call.1} parent=50 // pred_region
          %s347 = sand.u32 %s67, 1
          %s348 = scalar_lea.sflag [#allocation5], %s347
          %s349 = sand.u32 %s67, 1
          %s350 = smul.addr %s349, 16
          %s351 = scalar_lea.vmem [#allocation6], %s350
          %352 = dma.done %s348, 256
        $region55: #{tpu_custom_call.1} parent=50 // pred_fallthru
          _
      $region51: #{tpu_custom_call.1} parent=5 // pred_fallthru
        _
    $region6: #{tpu_custom_call.1} parent=1 // loop_footer
      %s17 = sadd.s32 1, %s13
    $region7: #{tpu_custom_call.1} parent=1 // loop_footer_branch
      %12 = sbr.rel target = $region3
    $region8: #{tpu_custom_call.1} parent=1 // loop_exit
      _
    %353 = vsyncpa [#allocation4], 1
    %s354 = scalar_lea.sflag [#allocation4], 1
    %355 = vsyncpa %s354, 1
    %356 = vsyncpa [#allocation5], 1
    %s357 = scalar_lea.sflag [#allocation5], 1
    %358 = vsyncpa %s357, 1

</llo_original>
